<compile_context>
chip_gen: v6e
topology: v6e:2x2x1
jax: 0.10.0
libtpu: 0.0.40
codegen_flags: <defaults>
</compile_context>

<pallas_src>
import math

import jax
import jax.numpy as jnp
from jax.experimental import pallas as pl
from jax.experimental.pallas import tpu as pltpu

LANE = 128


def _round_up(x, m):
    return (x + m - 1) // m * m


def bbox_net_kernel(a_ref, g_ref,
                    w1_ref, b1_ref,
                    w2_ref, b2_ref,
                    w3_ref, b3_ref,
                    out_ref):
    # x = objs_vector + graph_objs_vector (f32 on the VPU — v5e has no bf16 VPU)
    x = a_ref[...] + g_ref[...]

    cdt = w1_ref.dtype  # MXU compute dtype (bf16 by default), f32 accumulation

    # Layer 1: Linear + ReLU
    h = jnp.dot(x.astype(cdt), w1_ref[...], preferred_element_type=jnp.float32)
    h = jnp.maximum(h + b1_ref[...], 0.0)

    # Layer 2: Linear + ReLU
    h = jnp.dot(h.astype(cdt), w2_ref[...], preferred_element_type=jnp.float32)
    h = jnp.maximum(h + b2_ref[...], 0.0)

    # Layer 3 (final, final_nonlinearity=True) — output columns padded to 128
    # so the store is lane-dense (unmasked vst).
    h = jnp.dot(h.astype(cdt), w3_ref[...], preferred_element_type=jnp.float32)
    h = jnp.maximum(h + b3_ref[...], 0.0)

    out_ref[...] = h.astype(out_ref.dtype)


def bbox_net_forward(objs_vector, graph_objs_vector, params,
                     *, compute_dtype=jnp.bfloat16, row_tile=128):
    """params = [(W1, b1), (W2, b2), (W3, b3)] with W_i: (D_in, D_out), b_i: (1, D_out).

    Rows (objects across stacked graphs) are tiled along a 'parallel' grid
    axis; weights stay VMEM-resident across grid steps.
    """
    n, d0 = objs_vector.shape
    (w1, b1), (w2, b2), (w3, b3) = params
    d1, d2, d_out = w1.shape[1], w2.shape[1], w3.shape[1]

    # ---- lane-dense output: zero-pad last layer to a multiple of 128 columns ----
    d_out_pad = _round_up(max(d_out, LANE), LANE)
    w3p = jnp.zeros((w3.shape[0], d_out_pad), w3.dtype).at[:, :d_out].set(w3)
    b3p = jnp.zeros((1, d_out_pad), b3.dtype).at[:, :d_out].set(b3)

    # MXU operands in compute_dtype (bf16 on v6e/v7x); biases stay f32.
    w1c = w1.astype(compute_dtype)
    w2c = w2.astype(compute_dtype)
    w3c = w3p.astype(compute_dtype)

    # ---- batch rows through the grid: row tile <=row_tile, pad N up to it ----
    tm = min(row_tile, _round_up(n, 8))
    n_pad = _round_up(n, tm)
    if n_pad != n:
        pad = ((0, n_pad - n), (0, 0))
        a = jnp.pad(objs_vector, pad)
        g = jnp.pad(graph_objs_vector, pad)
    else:
        a, g = objs_vector, graph_objs_vector

    grid = (n_pad // tm,)

    w_bytes = jnp.dtype(compute_dtype).itemsize
    flops = 2 * n_pad * (d0 * d1 + d1 * d2 + d2 * d_out_pad)
    bytes_accessed = (
        2 * n_pad * d0 * 4                                             # two f32 inputs
        + (d0 * d1 + d1 * d2 + w3.shape[0] * d_out_pad) * w_bytes      # weights
        + (d1 + d2 + d_out_pad) * 4                                    # biases
        + n_pad * d_out_pad * 4)                                       # output

    out_padded = pl.pallas_call(
        bbox_net_kernel,
        out_shape=jax.ShapeDtypeStruct((n_pad, d_out_pad), objs_vector.dtype),
        grid=grid,
        in_specs=[
            pl.BlockSpec((tm, d0), lambda i: (i, 0)),      # objs_vector tile
            pl.BlockSpec((tm, d0), lambda i: (i, 0)),      # graph_objs_vector tile
            pl.BlockSpec(w1c.shape, lambda i: (0, 0)),     # weights stay resident
            pl.BlockSpec(b1.shape, lambda i: (0, 0)),
            pl.BlockSpec(w2c.shape, lambda i: (0, 0)),
            pl.BlockSpec(b2.shape, lambda i: (0, 0)),
            pl.BlockSpec(w3c.shape, lambda i: (0, 0)),
            pl.BlockSpec(b3p.shape, lambda i: (0, 0)),
        ],
        out_specs=pl.BlockSpec((tm, d_out_pad), lambda i: (i, 0)),
        compiler_params=pltpu.CompilerParams(
            dimension_semantics=("parallel",)),            # shards grid across v7x's 2 TCs
        cost_estimate=pl.CostEstimate(
            flops=flops, transcendentals=0, bytes_accessed=bytes_accessed),
    )(a, g, w1c, b1, w2c, b2, w3c, b3p)

    # Slice away the row padding and the lane padding of the final layer.
    return out_padded[:n, :d_out]


def bbox_net_reference(objs_vector, graph_objs_vector, params,
                       compute_dtype=jnp.bfloat16):
    """Pure-JAX reference with the same bf16-operand / f32-accumulate recipe."""
    x = objs_vector + graph_objs_vector
    for w, b in params:
        h = jnp.dot(x.astype(compute_dtype), w.astype(compute_dtype),
                    preferred_element_type=jnp.float32)
        x = jnp.maximum(h + b, 0.0)
    return x


def init_params(key, dim_list):
    """Deterministic init mimicking nn.Linear's default uniform(-1/sqrt(d_in), 1/sqrt(d_in))."""
    params = []
    for i in range(len(dim_list) - 1):
        d_in, d_out = dim_list[i], dim_list[i + 1]
        key, kw, kb = jax.random.split(key, 3)
        bound = 1.0 / math.sqrt(d_in)
        w = jax.random.uniform(kw, (d_in, d_out), jnp.float32, -bound, bound)
        b = jax.random.uniform(kb, (1, d_out), jnp.float32, -bound, bound)
        params.append((w, b))
    return params


if __name__ == "__main__":
    key = jax.random.PRNGKey(0)

    # MLP dims [32, 64, 128, 4]; fold a small batch of graphs (B x N_OBJ objects)
    # into the row axis so each grid step feeds a full 128-row tile to the MXU
    # and the grid has 2 steps (exercises the 'parallel' megacore path).
    B, N_OBJ = 32, 8
    N = B * N_OBJ  # 256 rows -> grid=(2,) with TM=128
    dim_list = [32, 64, 128, 4]

    key, k1, k2, kp = jax.random.split(key, 4)
    objs_vector = jax.random.normal(k1, (N, dim_list[0]), jnp.float32)
    graph_objs_vector = jax.random.normal(k2, (N, dim_list[0]), jnp.float32)
    params = init_params(kp, dim_list)

    out = bbox_net_forward(objs_vector, graph_objs_vector, params)
    jax.block_until_ready(out)

    ref = bbox_net_reference(objs_vector, graph_objs_vector, params)
    assert out.shape == (N, dim_list[-1]), f"bad output shape {out.shape}"
    assert jnp.allclose(out, ref, atol=1e-3, rtol=1e-3), "mismatch vs reference"

    print("KERNEL_OK")
</pallas_src>

<mosaic_0001>
module attributes {stable_mosaic.version = 11 : i64} {
  func.func @bbox_net_kernel(%arg0: i32, %arg1: memref<128x32xf32, #tpu.memory_space<vmem>>, %arg2: memref<128x32xf32, #tpu.memory_space<vmem>>, %arg3: memref<32x64xbf16, #tpu.memory_space<vmem>>, %arg4: memref<1x64xf32, #tpu.memory_space<vmem>>, %arg5: memref<64x128xbf16, #tpu.memory_space<vmem>>, %arg6: memref<1x128xf32, #tpu.memory_space<vmem>>, %arg7: memref<128x128xbf16, #tpu.memory_space<vmem>>, %arg8: memref<1x128xf32, #tpu.memory_space<vmem>>, %arg9: memref<128x128xf32, #tpu.memory_space<vmem>>) attributes {dimension_semantics = [#tpu.dimension_semantics<parallel>], iteration_bounds = array<i64: 2>, scalar_prefetch = 0 : i64, scratch_operands = 0 : i64, tpu.core_type = #tpu.core_type<tc>, window_params = [{transform_indices = @transform_0, window_bounds = array<i64: 128, 32>}, {transform_indices = @transform_1, window_bounds = array<i64: 128, 32>}, {pipeline_mode = #tpu.pipeline_mode<synchronous>, transform_indices = @transform_2, window_bounds = array<i64: 32, 64>}, {pipeline_mode = #tpu.pipeline_mode<synchronous>, transform_indices = @transform_3, window_bounds = array<i64: 1, 64>}, {pipeline_mode = #tpu.pipeline_mode<synchronous>, transform_indices = @transform_4, window_bounds = array<i64: 64, 128>}, {pipeline_mode = #tpu.pipeline_mode<synchronous>, transform_indices = @transform_5, window_bounds = array<i64: 1, 128>}, {pipeline_mode = #tpu.pipeline_mode<synchronous>, transform_indices = @transform_6, window_bounds = array<i64: 128, 128>}, {pipeline_mode = #tpu.pipeline_mode<synchronous>, transform_indices = @transform_7, window_bounds = array<i64: 1, 128>}, {transform_indices = @transform_8, window_bounds = array<i64: 128, 128>}]} {
    %c0 = arith.constant 0 : index
    %c0_0 = arith.constant 0 : index
    %0 = vector.load %arg1[%c0, %c0_0] : memref<128x32xf32, #tpu.memory_space<vmem>>, vector<128x32xf32>
    %c0_1 = arith.constant 0 : index
    %c0_2 = arith.constant 0 : index
    %1 = vector.load %arg2[%c0_1, %c0_2] : memref<128x32xf32, #tpu.memory_space<vmem>>, vector<128x32xf32>
    %2 = arith.addf %0, %1 : vector<128x32xf32>
    %3 = arith.truncf %2 : vector<128x32xf32> to vector<128x32xbf16>
    %c0_3 = arith.constant 0 : index
    %c0_4 = arith.constant 0 : index
    %4 = vector.load %arg3[%c0_3, %c0_4] : memref<32x64xbf16, #tpu.memory_space<vmem>>, vector<32x64xbf16>
    %cst = arith.constant dense<0.000000e+00> : vector<128x64xf32>
    %5 = tpu.matmul %3, %4, %cst {dimension_numbers = #tpu.dot_dimension_numbers<[1], [0], [0], [1], [0, 0, 1, 1], [], []>} : vector<128x32xbf16>, vector<32x64xbf16>, vector<128x64xf32> -> vector<128x64xf32>
    %c0_5 = arith.constant 0 : index
    %c0_6 = arith.constant 0 : index
    %6 = vector.load %arg4[%c0_5, %c0_6] : memref<1x64xf32, #tpu.memory_space<vmem>>, vector<1x64xf32>
    %7 = vector.broadcast %6 : vector<1x64xf32> to vector<128x64xf32>
    %8 = arith.addf %5, %7 : vector<128x64xf32>
    %cst_7 = arith.constant 0.000000e+00 : f32
    %9 = vector.broadcast %cst_7 : f32 to vector<128x64xf32>
    %10 = arith.maximumf %8, %9 : vector<128x64xf32>
    %11 = arith.truncf %10 : vector<128x64xf32> to vector<128x64xbf16>
    %c0_8 = arith.constant 0 : index
    %c0_9 = arith.constant 0 : index
    %12 = vector.load %arg5[%c0_8, %c0_9] : memref<64x128xbf16, #tpu.memory_space<vmem>>, vector<64x128xbf16>
    %cst_10 = arith.constant dense<0.000000e+00> : vector<128x128xf32>
    %13 = tpu.matmul %11, %12, %cst_10 {dimension_numbers = #tpu.dot_dimension_numbers<[1], [0], [0], [1], [0, 0, 1, 1], [], []>} : vector<128x64xbf16>, vector<64x128xbf16>, vector<128x128xf32> -> vector<128x128xf32>
    %c0_11 = arith.constant 0 : index
    %c0_12 = arith.constant 0 : index
    %14 = vector.load %arg6[%c0_11, %c0_12] : memref<1x128xf32, #tpu.memory_space<vmem>>, vector<1x128xf32>
    %15 = vector.broadcast %14 : vector<1x128xf32> to vector<128x128xf32>
    %16 = arith.addf %13, %15 : vector<128x128xf32>
    %cst_13 = arith.constant 0.000000e+00 : f32
    %17 = vector.broadcast %cst_13 : f32 to vector<128x128xf32>
    %18 = arith.maximumf %16, %17 : vector<128x128xf32>
    %19 = arith.truncf %18 : vector<128x128xf32> to vector<128x128xbf16>
    %c0_14 = arith.constant 0 : index
    %c0_15 = arith.constant 0 : index
    %20 = vector.load %arg7[%c0_14, %c0_15] : memref<128x128xbf16, #tpu.memory_space<vmem>>, vector<128x128xbf16>
    %cst_16 = arith.constant dense<0.000000e+00> : vector<128x128xf32>
    %21 = tpu.matmul %19, %20, %cst_16 {dimension_numbers = #tpu.dot_dimension_numbers<[1], [0], [0], [1], [0, 0, 1, 1], [], []>} : vector<128x128xbf16>, vector<128x128xbf16>, vector<128x128xf32> -> vector<128x128xf32>
    %c0_17 = arith.constant 0 : index
    %c0_18 = arith.constant 0 : index
    %22 = vector.load %arg8[%c0_17, %c0_18] : memref<1x128xf32, #tpu.memory_space<vmem>>, vector<1x128xf32>
    %23 = vector.broadcast %22 : vector<1x128xf32> to vector<128x128xf32>
    %24 = arith.addf %21, %23 : vector<128x128xf32>
    %cst_19 = arith.constant 0.000000e+00 : f32
    %25 = vector.broadcast %cst_19 : f32 to vector<128x128xf32>
    %26 = arith.maximumf %24, %25 : vector<128x128xf32>
    %c0_20 = arith.constant 0 : index
    %c0_21 = arith.constant 0 : index
    %27 = vector.load %arg9[%c0_20, %c0_21] : memref<128x128xf32, #tpu.memory_space<vmem>>, vector<128x128xf32>
    tpu.vector_store %arg9[%c0_20, %c0_21], %26 {strides = array<i32>} : memref<128x128xf32, #tpu.memory_space<vmem>>, vector<128x128xf32>,
    return
  }
  func.func @transform_0(%arg0: i32) -> (i32, i32) {
    %c0_i32 = arith.constant 0 : i32
    %c0_i32_0 = arith.constant 0 : i32
    return %arg0, %c0_i32 : i32, i32
  }
  func.func @transform_1(%arg0: i32) -> (i32, i32) {
    %c0_i32 = arith.constant 0 : i32
    %c0_i32_0 = arith.constant 0 : i32
    return %arg0, %c0_i32 : i32, i32
  }
  func.func @transform_2(%arg0: i32) -> (i32, i32) {
    %c0_i32 = arith.constant 0 : i32
    %c0_i32_0 = arith.constant 0 : i32
    %c0_i32_1 = arith.constant 0 : i32
    return %c0_i32, %c0_i32_0 : i32, i32
  }
  func.func @transform_3(%arg0: i32) -> (i32, i32) {
    %c0_i32 = arith.constant 0 : i32
    %c0_i32_0 = arith.constant 0 : i32
    %c0_i32_1 = arith.constant 0 : i32
    return %c0_i32, %c0_i32_0 : i32, i32
  }
  func.func @transform_4(%arg0: i32) -> (i32, i32) {
    %c0_i32 = arith.constant 0 : i32
    %c0_i32_0 = arith.constant 0 : i32
    %c0_i32_1 = arith.constant 0 : i32
    return %c0_i32, %c0_i32_0 : i32, i32
  }
  func.func @transform_5(%arg0: i32) -> (i32, i32) {
    %c0_i32 = arith.constant 0 : i32
    %c0_i32_0 = arith.constant 0 : i32
    %c0_i32_1 = arith.constant 0 : i32
    return %c0_i32, %c0_i32_0 : i32, i32
  }
  func.func @transform_6(%arg0: i32) -> (i32, i32) {
    %c0_i32 = arith.constant 0 : i32
    %c0_i32_0 = arith.constant 0 : i32
    %c0_i32_1 = arith.constant 0 : i32
    return %c0_i32, %c0_i32_0 : i32, i32
  }
  func.func @transform_7(%arg0: i32) -> (i32, i32) {
    %c0_i32 = arith.constant 0 : i32
    %c0_i32_0 = arith.constant 0 : i32
    %c0_i32_1 = arith.constant 0 : i32
    return %c0_i32, %c0_i32_0 : i32, i32
  }
  func.func @transform_8(%arg0: i32) -> (i32, i32) {
    %c0_i32 = arith.constant 0 : i32
    %c0_i32_0 = arith.constant 0 : i32
    return %arg0, %c0_i32 : i32, i32
  }
}

</mosaic_0001>

<llo_original>
// kernel: tpu_custom_call.1
$region0: #{tpu_custom_call.1}
  #allocation0 [shape = 'u32[]', space=smem, size = 0x4, offset = 0x4, fixed_abs, tag = 'smem constant byte address 0x4 - core index']
  #allocation1 [shape = 'u32[144,128]{1,0:T(1,128)}', space=vmem, size = 0x12000, scoped, tag = 'internal scratch']
  %s0 = inlined_call_operand.vmem [shape: f32[256,32], index: 0, kind: input, shape index: {}]
  %s1 = inlined_call_operand.vmem [shape: f32[256,32], index: 1, kind: input, shape index: {}]
  %s2 = inlined_call_operand.vmem [shape: bf16[32,64], index: 2, kind: input, shape index: {}]
  %s3 = inlined_call_operand.vmem [shape: f32[1,64], index: 3, kind: input, shape index: {}]
  %s4 = inlined_call_operand.vmem [shape: bf16[64,128], index: 4, kind: input, shape index: {}]
  %s5 = inlined_call_operand.vmem [shape: f32[1,128], index: 5, kind: input, shape index: {}]
  %s6 = inlined_call_operand.vmem [shape: bf16[128,128], index: 6, kind: input, shape index: {}]
  %s7 = inlined_call_operand.vmem [shape: f32[1,128], index: 7, kind: input, shape index: {}]
  %s8 = inlined_call_operand.hbm [shape: f32[256,128], index: 8, kind: output, shape index: {}]
  %s9 = sld [smem:[#allocation0]]
  $region65: #{tpu_custom_call.1} parent=0
    _
  %s11 = ssub.s32 1, %s9
  %s12 = scalar_select 0, %s11, %s9
  $region1: #{tpu_custom_call.1} parent=0
    #allocation2 [shape = 'u8[131072]{0}', space=vmem, size = 0x20000, scoped, tag = 'output window, operand 0']
    #allocation3 [shape = 's32[2]{0}', space=sflag, size = 0x8, scoped, tag = 'scoped memory for tpu_custom_call.1']
    %13 = vsyncpa [#allocation3], 0
    %s14 = scalar_lea.sflag [#allocation3], 1
    %15 = vsyncpa %s14, 0
    loop: start=0, step=1, limit=4
    $region2: #{tpu_custom_call.1} parent=1 // loop_pre_header
      _
    $region3: #{tpu_custom_call.1} parent=1 // loop_header
      %s17 = sphi 0, %s21
      %p18 = scmp.ge.s32.totalorder %s17, 4
      %s27 = sphi 0, %s29
      %s30 = sphi 0, %s27
      %s31 = sphi 0, %s30
      %s47 = sphi 0, %s31
      %s53 = sphi 0, %s55
      %s56 = sphi 0, %s53
      %s57 = sphi 0, %s56
      %s73 = sphi 0, %s57
      %s77 = sphi 0, %s77
      %s79 = sphi 0, %s77
      %s80 = sphi 0, %s79
      %s94 = sphi 0, %s80
      %s98 = sphi 0, %s98
      %s100 = sphi 0, %s98
      %s101 = sphi 0, %s100
      %s115 = sphi 0, %s101
      %s119 = sphi 0, %s119
      %s121 = sphi 0, %s119
      %s122 = sphi 0, %s121
      %s136 = sphi 0, %s122
      %s140 = sphi 0, %s140
      %s142 = sphi 0, %s140
      %s143 = sphi 0, %s142
      %s157 = sphi 0, %s143
      %s161 = sphi 0, %s161
      %s163 = sphi 0, %s161
      %s164 = sphi 0, %s163
      %s178 = sphi 0, %s164
      %s182 = sphi 0, %s182
      %s184 = sphi 0, %s182
      %s185 = sphi 0, %s184
      %s199 = sphi 0, %s185
      %s205 = sphi 0, %s207
      %s208 = sphi 0, %s205
      %s209 = sphi 0, %s208
      %s225 = sphi 0, %s209
    $region4: #{tpu_custom_call.1} parent=1 // loop_header_branch
      %20 = sbr.rel (%p18) target = $region8
    $region5: #{tpu_custom_call.1} parent=1 // loop_body
      %s22 = ssub.s32 %s17, 1
      %s23 = ssub.s32 %s17, 2
      %s24 = sadd.s32 %s17, 1
      %s25 = ssub.s32 %s17, %s24
      %p26 = scmp.eq.s32.totalorder %s25, 0
      %s28 = sadd.s32 %s27, 1
      %s29 = scalar_select %p26, %s27, %s28
      %p32 = pneg %p26
      %p33 = scmp.eq.s32.totalorder %s17, 1
      %p34 = por %p32, %p33
      %p35 = scmp.ne.s32.totalorder %s27, %s30
      %p36 = scmp.eq.s32.totalorder %s17, 0
      %p37 = por %p35, %p36
      %p38 = scmp.ne.s32.totalorder %s27, %s30
      %p39 = scmp.eq.s32.totalorder %s22, 1
      %p40 = por %p38, %p39
      %p41 = scmp.ne.s32.totalorder %s30, %s31
      %p42 = scmp.eq.s32.totalorder %s22, 0
      %p43 = por %p41, %p42
      %p44 = scmp.ne.s32.totalorder %s30, %s31
      %p45 = scmp.eq.s32.totalorder %s23, 1
      %p46 = por %p44, %p45
      %p48 = scmp.ne.s32.totalorder %s31, %s47
      %p49 = scmp.eq.s32.totalorder %s23, 0
      %p50 = por %p48, %p49
      %s51 = ssub.s32 %s17, %s24
      %p52 = scmp.eq.s32.totalorder %s51, 0
      %s54 = sadd.s32 %s53, 1
      %s55 = scalar_select %p52, %s53, %s54
      %p58 = pneg %p52
      %p59 = scmp.eq.s32.totalorder %s17, 1
      %p60 = por %p58, %p59
      %p61 = scmp.ne.s32.totalorder %s53, %s56
      %p62 = scmp.eq.s32.totalorder %s17, 0
      %p63 = por %p61, %p62
      %p64 = scmp.ne.s32.totalorder %s53, %s56
      %p65 = scmp.eq.s32.totalorder %s22, 1
      %p66 = por %p64, %p65
      %p67 = scmp.ne.s32.totalorder %s56, %s57
      %p68 = scmp.eq.s32.totalorder %s22, 0
      %p69 = por %p67, %p68
      %p70 = scmp.ne.s32.totalorder %s56, %s57
      %p71 = scmp.eq.s32.totalorder %s23, 1
      %p72 = por %p70, %p71
      %p74 = scmp.ne.s32.totalorder %s57, %s73
      %p75 = scmp.eq.s32.totalorder %s23, 0
      %p76 = por %p74, %p75
      %s78 = sadd.s32 %s77, 1
      %p81 = scmp.eq.s32.totalorder %s17, 1
      %p82 = scmp.ne.s32.totalorder %s77, %s79
      %p83 = scmp.eq.s32.totalorder %s17, 0
      %p84 = por %p82, %p83
      %p85 = scmp.ne.s32.totalorder %s77, %s79
      %p86 = scmp.eq.s32.totalorder %s22, 1
      %p87 = por %p85, %p86
      %p88 = scmp.ne.s32.totalorder %s79, %s80
      %p89 = scmp.eq.s32.totalorder %s22, 0
      %p90 = por %p88, %p89
      %p91 = scmp.ne.s32.totalorder %s79, %s80
      %p92 = scmp.eq.s32.totalorder %s23, 1
      %p93 = por %p91, %p92
      %p95 = scmp.ne.s32.totalorder %s80, %s94
      %p96 = scmp.eq.s32.totalorder %s23, 0
      %p97 = por %p95, %p96
      %s99 = sadd.s32 %s98, 1
      %p102 = scmp.eq.s32.totalorder %s17, 1
      %p103 = scmp.ne.s32.totalorder %s98, %s100
      %p104 = scmp.eq.s32.totalorder %s17, 0
      %p105 = por %p103, %p104
      %p106 = scmp.ne.s32.totalorder %s98, %s100
      %p107 = scmp.eq.s32.totalorder %s22, 1
      %p108 = por %p106, %p107
      %p109 = scmp.ne.s32.totalorder %s100, %s101
      %p110 = scmp.eq.s32.totalorder %s22, 0
      %p111 = por %p109, %p110
      %p112 = scmp.ne.s32.totalorder %s100, %s101
      %p113 = scmp.eq.s32.totalorder %s23, 1
      %p114 = por %p112, %p113
      %p116 = scmp.ne.s32.totalorder %s101, %s115
      %p117 = scmp.eq.s32.totalorder %s23, 0
      %p118 = por %p116, %p117
      %s120 = sadd.s32 %s119, 1
      %p123 = scmp.eq.s32.totalorder %s17, 1
      %p124 = scmp.ne.s32.totalorder %s119, %s121
      %p125 = scmp.eq.s32.totalorder %s17, 0
      %p126 = por %p124, %p125
      %p127 = scmp.ne.s32.totalorder %s119, %s121
      %p128 = scmp.eq.s32.totalorder %s22, 1
      %p129 = por %p127, %p128
      %p130 = scmp.ne.s32.totalorder %s121, %s122
      %p131 = scmp.eq.s32.totalorder %s22, 0
      %p132 = por %p130, %p131
      %p133 = scmp.ne.s32.totalorder %s121, %s122
      %p134 = scmp.eq.s32.totalorder %s23, 1
      %p135 = por %p133, %p134
      %p137 = scmp.ne.s32.totalorder %s122, %s136
      %p138 = scmp.eq.s32.totalorder %s23, 0
      %p139 = por %p137, %p138
      %s141 = sadd.s32 %s140, 1
      %p144 = scmp.eq.s32.totalorder %s17, 1
      %p145 = scmp.ne.s32.totalorder %s140, %s142
      %p146 = scmp.eq.s32.totalorder %s17, 0
      %p147 = por %p145, %p146
      %p148 = scmp.ne.s32.totalorder %s140, %s142
      %p149 = scmp.eq.s32.totalorder %s22, 1
      %p150 = por %p148, %p149
      %p151 = scmp.ne.s32.totalorder %s142, %s143
      %p152 = scmp.eq.s32.totalorder %s22, 0
      %p153 = por %p151, %p152
      %p154 = scmp.ne.s32.totalorder %s142, %s143
      %p155 = scmp.eq.s32.totalorder %s23, 1
      %p156 = por %p154, %p155
      %p158 = scmp.ne.s32.totalorder %s143, %s157
      %p159 = scmp.eq.s32.totalorder %s23, 0
      %p160 = por %p158, %p159
      %s162 = sadd.s32 %s161, 1
      %p165 = scmp.eq.s32.totalorder %s17, 1
      %p166 = scmp.ne.s32.totalorder %s161, %s163
      %p167 = scmp.eq.s32.totalorder %s17, 0
      %p168 = por %p166, %p167
      %p169 = scmp.ne.s32.totalorder %s161, %s163
      %p170 = scmp.eq.s32.totalorder %s22, 1
      %p171 = por %p169, %p170
      %p172 = scmp.ne.s32.totalorder %s163, %s164
      %p173 = scmp.eq.s32.totalorder %s22, 0
      %p174 = por %p172, %p173
      %p175 = scmp.ne.s32.totalorder %s163, %s164
      %p176 = scmp.eq.s32.totalorder %s23, 1
      %p177 = por %p175, %p176
      %p179 = scmp.ne.s32.totalorder %s164, %s178
      %p180 = scmp.eq.s32.totalorder %s23, 0
      %p181 = por %p179, %p180
      %s183 = sadd.s32 %s182, 1
      %p186 = scmp.eq.s32.totalorder %s17, 1
      %p187 = scmp.ne.s32.totalorder %s182, %s184
      %p188 = scmp.eq.s32.totalorder %s17, 0
      %p189 = por %p187, %p188
      %p190 = scmp.ne.s32.totalorder %s182, %s184
      %p191 = scmp.eq.s32.totalorder %s22, 1
      %p192 = por %p190, %p191
      %p193 = scmp.ne.s32.totalorder %s184, %s185
      %p194 = scmp.eq.s32.totalorder %s22, 0
      %p195 = por %p193, %p194
      %p196 = scmp.ne.s32.totalorder %s184, %s185
      %p197 = scmp.eq.s32.totalorder %s23, 1
      %p198 = por %p196, %p197
      %p200 = scmp.ne.s32.totalorder %s185, %s199
      %p201 = scmp.eq.s32.totalorder %s23, 0
      %p202 = por %p200, %p201
      %s203 = ssub.s32 %s17, %s24
      %p204 = scmp.eq.s32.totalorder %s203, 0
      %s206 = sadd.s32 %s205, 1
      %s207 = scalar_select %p204, %s205, %s206
      %p210 = pneg %p204
      %p211 = scmp.eq.s32.totalorder %s17, 1
      %p212 = por %p210, %p211
      %p213 = scmp.ne.s32.totalorder %s205, %s208
      %p214 = scmp.eq.s32.totalorder %s17, 0
      %p215 = por %p213, %p214
      %p216 = scmp.ne.s32.totalorder %s205, %s208
      %p217 = scmp.eq.s32.totalorder %s22, 1
      %p218 = por %p216, %p217
      %p219 = scmp.ne.s32.totalorder %s208, %s209
      %p220 = scmp.eq.s32.totalorder %s22, 0
      %p221 = por %p219, %p220
      %p222 = scmp.ne.s32.totalorder %s208, %s209
      %p223 = scmp.eq.s32.totalorder %s23, 1
      %p224 = por %p222, %p223
      %p226 = scmp.ne.s32.totalorder %s209, %s225
      %p227 = scmp.eq.s32.totalorder %s23, 0
      %p228 = por %p226, %p227
      %p229 = scmp.le.s32.totalorder 1, %s17
      %p230 = scmp.lt.s32.totalorder %s17, 3
      %p231 = pnand %p229, %p230
      %p232 = pneg %p231
      // Predicated region
      $region9: #{tpu_custom_call.1} parent=5 // pred_check
        _
      $region10: #{tpu_custom_call.1} parent=5 // pred_check_branch
        %234 = sbr.rel (%p231) target = $region12
      $region11: #{tpu_custom_call.1} parent=5 // pred_region
        %s235 = ssub.s32 %s17, 1
        // Predicated region
        $region13: #{tpu_custom_call.1} parent=11 // pred_check
          %p236 = pneg %p90
        $region14: #{tpu_custom_call.1} parent=11 // pred_check_branch
          %238 = sbr.rel (%p236) target = $region16
        $region15: #{tpu_custom_call.1} parent=11 // pred_region
          _
        $region16: #{tpu_custom_call.1} parent=11 // pred_fallthru
          _
        // Predicated region
        $region17: #{tpu_custom_call.1} parent=11 // pred_check
          %p239 = pneg %p111
        $region18: #{tpu_custom_call.1} parent=11 // pred_check_branch
          %241 = sbr.rel (%p239) target = $region20
        $region19: #{tpu_custom_call.1} parent=11 // pred_region
          _
        $region20: #{tpu_custom_call.1} parent=11 // pred_fallthru
          _
        // Predicated region
        $region21: #{tpu_custom_call.1} parent=11 // pred_check
          %p242 = pneg %p132
        $region22: #{tpu_custom_call.1} parent=11 // pred_check_branch
          %244 = sbr.rel (%p242) target = $region24
        $region23: #{tpu_custom_call.1} parent=11 // pred_region
          _
        $region24: #{tpu_custom_call.1} parent=11 // pred_fallthru
          _
        // Predicated region
        $region25: #{tpu_custom_call.1} parent=11 // pred_check
          %p245 = pneg %p153
        $region26: #{tpu_custom_call.1} parent=11 // pred_check_branch
          %247 = sbr.rel (%p245) target = $region28
        $region27: #{tpu_custom_call.1} parent=11 // pred_region
          _
        $region28: #{tpu_custom_call.1} parent=11 // pred_fallthru
          _
        // Predicated region
        $region29: #{tpu_custom_call.1} parent=11 // pred_check
          %p248 = pneg %p174
        $region30: #{tpu_custom_call.1} parent=11 // pred_check_branch
          %250 = sbr.rel (%p248) target = $region32
        $region31: #{tpu_custom_call.1} parent=11 // pred_region
          _
        $region32: #{tpu_custom_call.1} parent=11 // pred_fallthru
          _
        // Predicated region
        $region33: #{tpu_custom_call.1} parent=11 // pred_check
          %p251 = pneg %p195
        $region34: #{tpu_custom_call.1} parent=11 // pred_check_branch
          %253 = sbr.rel (%p251) target = $region36
        $region35: #{tpu_custom_call.1} parent=11 // pred_region
          _
        $region36: #{tpu_custom_call.1} parent=11 // pred_fallthru
          _
      $region12: #{tpu_custom_call.1} parent=5 // pred_fallthru
        _
      %p254 = scmp.lt.s32.totalorder %s17, 2
      // Predicated region
      $region37: #{tpu_custom_call.1} parent=5 // pred_check
        %p255 = pneg %p254
      $region38: #{tpu_custom_call.1} parent=5 // pred_check_branch
        %257 = sbr.rel (%p255) target = $region40
      $region39: #{tpu_custom_call.1} parent=5 // pred_region
        // Predicated region
        $region41: #{tpu_custom_call.1} parent=39 // pred_check
          %p258 = pneg %p37
        $region42: #{tpu_custom_call.1} parent=39 // pred_check_branch
          %260 = sbr.rel (%p258) target = $region44
        $region43: #{tpu_custom_call.1} parent=39 // pred_region
          %s261 = smul.u32 16, %s17
          %p262 = scmp.lt.s32.totalorder %s261, 31
          %s263 = scalar_select %p262, %s261, 31
          %s264 = smul.addr %s263, 8
          %s265 = scalar_lea.vmem %s0, %s264
          %s266 = smul.u32 16, %s17
        $region44: #{tpu_custom_call.1} parent=39 // pred_fallthru
          _
        // Predicated region
        $region45: #{tpu_custom_call.1} parent=39 // pred_check
          %p267 = pneg %p63
        $region46: #{tpu_custom_call.1} parent=39 // pred_check_branch
          %269 = sbr.rel (%p267) target = $region48
        $region47: #{tpu_custom_call.1} parent=39 // pred_region
          %s270 = smul.u32 16, %s17
          %p271 = scmp.lt.s32.totalorder %s270, 31
          %s272 = scalar_select %p271, %s270, 31
          %s273 = smul.addr %s272, 8
          %s274 = scalar_lea.vmem %s1, %s273
          %s275 = smul.u32 16, %s17
        $region48: #{tpu_custom_call.1} parent=39 // pred_fallthru
          _
      $region40: #{tpu_custom_call.1} parent=5 // pred_fallthru
        _
      %p276 = scmp.le.s32.totalorder 1, %s17
      %p277 = scmp.lt.s32.totalorder %s17, 3
      %p278 = pnand %p276, %p277
      %p279 = pneg %p278
      // Predicated region
      $region49: #{tpu_custom_call.1} parent=5 // pred_check
        _
      $region50: #{tpu_custom_call.1} parent=5 // pred_check_branch
        %281 = sbr.rel (%p278) target = $region52
      $region51: #{tpu_custom_call.1} parent=5 // pred_region
        %s282 = ssub.s32 %s17, 1
        %s283 = smul.u32 16, %s22
        %p284 = scmp.lt.s32.totalorder %s283, 31
        %s285 = scalar_select %p284, %s283, 31
        %s286 = smul.addr %s285, 8
        %s287 = scalar_lea.vmem %s0, %s286
        %p288 = pneg %p43
        %p289 = pneg %p40
        %s290 = smul.u32 16, %s22
        %p291 = scmp.lt.s32.totalorder %s290, 31
        %s292 = scalar_select %p291, %s290, 31
        %s293 = smul.addr %s292, 8
        %s294 = scalar_lea.vmem %s1, %s293
        %p295 = pneg %p69
        %p296 = pneg %p66
        %p297 = pneg %p90
        %p298 = pneg %p87
        %p299 = pneg %p111
        %p300 = pneg %p108
        %p301 = pneg %p132
        %p302 = pneg %p129
        %p303 = pneg %p153
        %p304 = pneg %p150
        %p305 = pneg %p174
        %p306 = pneg %p171
        %p307 = pneg %p195
        %p308 = pneg %p192
        %p309 = pneg %p221
        %p310 = pneg %p218
        %s311 = sand.u32 %s208, 1
        %s312 = scalar_lea.sflag [#allocation3], %s311
        %s313 = sand.u32 %s208, 1
        %s314 = smul.addr %s313, 128
        %s315 = scalar_lea.vmem [#allocation2], %s314
        %s316 = smul.u32 16, %s22
        %p317 = scmp.lt.s32.totalorder %s316, 31
        %s318 = scalar_select %p317, %s316, 31
        %s319 = smul.addr %s318, 8
        %s320 = scalar_lea.vmem %s0, %s319
        %s321 = smul.u32 16, %s22
        %s322 = smul.u32 16, %s22
        %p323 = scmp.lt.s32.totalorder %s322, 31
        %s324 = scalar_select %p323, %s322, 31
        %s325 = smul.addr %s324, 8
        %s326 = scalar_lea.vmem %s1, %s325
        %s327 = smul.u32 16, %s22
        %s328 = smul.u32 16, %s22
        %v330 = vld [vmem:[%s320] sm:$0xff]
        %v331 = vld [vmem:[%s320 + $0x8] sm:$0xff]
        %v332 = vld [vmem:[%s320 + $0x10] sm:$0xff]
        %v333 = vld [vmem:[%s320 + $0x18] sm:$0xff]
        %v334 = vld [vmem:[%s320 + $0x20] sm:$0xff]
        %v335 = vld [vmem:[%s320 + $0x28] sm:$0xff]
        %v336 = vld [vmem:[%s320 + $0x30] sm:$0xff]
        %v337 = vld [vmem:[%s320 + $0x38] sm:$0xff]
        %v338 = vld [vmem:[%s320 + $0x40] sm:$0xff]
        %v339 = vld [vmem:[%s320 + $0x48] sm:$0xff]
        %v340 = vld [vmem:[%s320 + $0x50] sm:$0xff]
        %v341 = vld [vmem:[%s320 + $0x58] sm:$0xff]
        %v342 = vld [vmem:[%s320 + $0x60] sm:$0xff]
        %v343 = vld [vmem:[%s320 + $0x68] sm:$0xff]
        %v344 = vld [vmem:[%s320 + $0x70] sm:$0xff]
        %v345 = vld [vmem:[%s320 + $0x78] sm:$0xff]
        %v346 = vld [vmem:[%s326] sm:$0xff]
        %v347 = vld [vmem:[%s326 + $0x8] sm:$0xff]
        %v348 = vld [vmem:[%s326 + $0x10] sm:$0xff]
        %v349 = vld [vmem:[%s326 + $0x18] sm:$0xff]
        %v350 = vld [vmem:[%s326 + $0x20] sm:$0xff]
        %v351 = vld [vmem:[%s326 + $0x28] sm:$0xff]
        %v352 = vld [vmem:[%s326 + $0x30] sm:$0xff]
        %v353 = vld [vmem:[%s326 + $0x38] sm:$0xff]
        %v354 = vld [vmem:[%s326 + $0x40] sm:$0xff]
        %v355 = vld [vmem:[%s326 + $0x48] sm:$0xff]
        %v356 = vld [vmem:[%s326 + $0x50] sm:$0xff]
        %v357 = vld [vmem:[%s326 + $0x58] sm:$0xff]
        %v358 = vld [vmem:[%s326 + $0x60] sm:$0xff]
        %v359 = vld [vmem:[%s326 + $0x68] sm:$0xff]
        %v360 = vld [vmem:[%s326 + $0x70] sm:$0xff]
        %v361 = vld [vmem:[%s326 + $0x78] sm:$0xff]
        %v362 = vadd.f32 %v330, %v346
        %v363 = vadd.f32 %v331, %v347
        %v364 = vadd.f32 %v332, %v348
        %v365 = vadd.f32 %v333, %v349
        %v366 = vadd.f32 %v334, %v350
        %v367 = vadd.f32 %v335, %v351
        %v368 = vadd.f32 %v336, %v352
        %v369 = vadd.f32 %v337, %v353
        %v370 = vadd.f32 %v338, %v354
        %v371 = vadd.f32 %v339, %v355
        %v372 = vadd.f32 %v340, %v356
        %v373 = vadd.f32 %v341, %v357
        %v374 = vadd.f32 %v342, %v358
        %v375 = vadd.f32 %v343, %v359
        %v376 = vadd.f32 %v344, %v360
        %v377 = vadd.f32 %v345, %v361
        %v378 = vpack.c.bf16 %v363, %v362
        %v379 = vpack.c.bf16 %v365, %v364
        %v380 = vpack.c.bf16 %v367, %v366
        %v381 = vpack.c.bf16 %v369, %v368
        %v382 = vpack.c.bf16 %v371, %v370
        %v383 = vpack.c.bf16 %v373, %v372
        %v384 = vpack.c.bf16 %v375, %v374
        %v385 = vpack.c.bf16 %v377, %v376
        %v386 = vld [vmem:[%s2] sm:$0xf]
        %v387 = vld [vmem:[%s2 + $0x4] sm:$0xf]
        %v388 = vld [vmem:[%s2 + $0x8] sm:$0xf]
        %v389 = vld [vmem:[%s2 + $0xc] sm:$0xf]
        %v390 = vld [vmem:[%s3] sm:$0x1]
        %v392 = vlaneseq
        %v393 = vshrl.u32 %v392, 7
        %v394 = vsub.s32 0, %v393
        %v395 = vrot.slane %v390, %v394
        %v401 = vunpack.c.l.b16 %v386
        %v402 = vunpack.c.l.b16 %v387
        %v403 = vunpack.c.l.b16 %v388
        %v404 = vunpack.c.l.b16 %v389
        %v405 = vpack.c.b16 %v402, %v401
        %v406 = vpack.c.b16 %v404, %v403
        %vm409 = vcmask 261120
        %v411 = vsel %vm409, %v378, 0
        %v414 = vsel %vm409, %v379, 0
        %v417 = vsel %vm409, %v380, 0
        %v420 = vsel %vm409, %v381, 0
        %v423 = vsel %vm409, %v382, 0
        %v426 = vsel %vm409, %v383, 0
        %v429 = vsel %vm409, %v384, 0
        %v432 = vsel %vm409, %v385, 0
        %434 = vmatprep.subr.bf16.mxu0 0
        %435 = vmatpush1.bf16.msra.mxu0 0
        %436 = vmatprep.subr.bf16.mxu0 0
        %437 = vmatpush1.bf16.msra.mxu0 0
        %438 = vmatprep.subr.bf16.mxu0 0
        %439 = vmatpush1.bf16.msra.mxu0 0
        %440 = vmatprep.subr.bf16.mxu0 0
        %441 = vmatpush1.bf16.msra.mxu0 0
        %442 = vmatprep.subr.bf16.mxu0 0
        %443 = vmatpush1.bf16.msra.mxu0 0
        %444 = vmatprep.subr.bf16.mxu0 0
        %445 = vmatpush1.bf16.msra.mxu0 0
        %446 = vmatprep.subr.bf16.mxu0 0
        %447 = vmatpush1.bf16.msra.mxu0 %v406
        %448 = vmatprep.subr.bf16.mxu0 0
        %449 = vmatpush1.bf16.msra.mxu0 %v405
        %450 = vmatprep.subr.bf16.mxu0 0
        %451 = vmatpush2.bf16.msra.mxu0 0
        %452 = vmatprep.subr.bf16.mxu0 0
        %453 = vmatpush2.bf16.msra.mxu0 0
        %454 = vmatprep.subr.bf16.mxu0 0
        %455 = vmatpush2.bf16.msra.mxu0 0
        %456 = vmatprep.subr.bf16.mxu0 0
        %457 = vmatpush2.bf16.msra.mxu0 0
        %458 = vmatprep.subr.bf16.mxu0 0
        %459 = vmatpush2.bf16.msra.mxu0 0
        %460 = vmatprep.subr.bf16.mxu0 0
        %461 = vmatpush2.bf16.msra.mxu0 0
        %462 = vmatprep.subr.bf16.mxu0 0
        %463 = vmatpush2.bf16.msra.mxu0 0
        %464 = vmatprep.subr.bf16.mxu0 0
        %465 = vmatpush2.bf16.msra.mxu0 0
        %466 = vmatprep.mubr.bf16.mxu0 0
        %467 = vmatmul.mubr.bf16.gmra.mxu0 %v411
        %v468 = vpop.f32.mrf.mxu0
        %v469 = vadd.f32 %v395, %v468
        %v470 = vpop.f32.mrf.mxu0
        %v471 = vpop.f32.mrf.mxu0
        %v472 = vadd.f32 %v395, %v471
        %v473 = vpop.f32.mrf.mxu0
        %474 = vmatprep.mubr.bf16.mxu0 0
        %475 = vmatmul.mubr.bf16.gmra.mxu0 %v414
        %v476 = vpop.f32.mrf.mxu0
        %v477 = vadd.f32 %v395, %v476
        %v478 = vpop.f32.mrf.mxu0
        %v479 = vpop.f32.mrf.mxu0
        %v480 = vadd.f32 %v395, %v479
        %v481 = vpop.f32.mrf.mxu0
        %482 = vmatprep.mubr.bf16.mxu0 0
        %483 = vmatmul.mubr.bf16.gmra.mxu0 %v417
        %v484 = vpop.f32.mrf.mxu0
        %v485 = vadd.f32 %v395, %v484
        %v486 = vpop.f32.mrf.mxu0
        %v487 = vpop.f32.mrf.mxu0
        %v488 = vadd.f32 %v395, %v487
        %v489 = vpop.f32.mrf.mxu0
        %490 = vmatprep.mubr.bf16.mxu0 0
        %491 = vmatmul.mubr.bf16.gmra.mxu0 %v420
        %v492 = vpop.f32.mrf.mxu0
        %v493 = vadd.f32 %v395, %v492
        %v494 = vpop.f32.mrf.mxu0
        %v495 = vpop.f32.mrf.mxu0
        %v496 = vadd.f32 %v395, %v495
        %v497 = vpop.f32.mrf.mxu0
        %498 = vmatprep.mubr.bf16.mxu0 0
        %499 = vmatmul.mubr.bf16.gmra.mxu0 %v423
        %v500 = vpop.f32.mrf.mxu0
        %v501 = vadd.f32 %v395, %v500
        %v502 = vpop.f32.mrf.mxu0
        %v503 = vpop.f32.mrf.mxu0
        %v504 = vadd.f32 %v395, %v503
        %v505 = vpop.f32.mrf.mxu0
        %506 = vmatprep.mubr.bf16.mxu0 0
        %507 = vmatmul.mubr.bf16.gmra.mxu0 %v426
        %v508 = vpop.f32.mrf.mxu0
        %v509 = vadd.f32 %v395, %v508
        %v510 = vpop.f32.mrf.mxu0
        %v511 = vpop.f32.mrf.mxu0
        %v512 = vadd.f32 %v395, %v511
        %v513 = vpop.f32.mrf.mxu0
        %514 = vmatprep.mubr.bf16.mxu0 0
        %515 = vmatmul.mubr.bf16.gmra.mxu0 %v429
        %v516 = vpop.f32.mrf.mxu0
        %v517 = vadd.f32 %v395, %v516
        %v518 = vpop.f32.mrf.mxu0
        %v519 = vpop.f32.mrf.mxu0
        %v520 = vadd.f32 %v395, %v519
        %v521 = vpop.f32.mrf.mxu0
        %522 = vmatprep.mubr.bf16.mxu0 0
        %523 = vmatmul.mubr.bf16.gmra.mxu0 %v432
        %v524 = vpop.f32.mrf.mxu0
        %v525 = vadd.f32 %v395, %v524
        %v526 = vpop.f32.mrf.mxu0
        %v527 = vpop.f32.mrf.mxu0
        %v528 = vadd.f32 %v395, %v527
        %v529 = vpop.f32.mrf.mxu0
        %530 = vdwg.mxu0
        %v531 = vmax.f32 %v469, 0.0
        %v532 = vmax.f32 %v472, 0.0
        %v533 = vmax.f32 %v477, 0.0
        %v534 = vmax.f32 %v480, 0.0
        %v535 = vmax.f32 %v485, 0.0
        %v536 = vmax.f32 %v488, 0.0
        %v537 = vmax.f32 %v493, 0.0
        %v538 = vmax.f32 %v496, 0.0
        %v539 = vmax.f32 %v501, 0.0
        %v540 = vmax.f32 %v504, 0.0
        %v541 = vmax.f32 %v509, 0.0
        %v542 = vmax.f32 %v512, 0.0
        %v543 = vmax.f32 %v517, 0.0
        %v544 = vmax.f32 %v520, 0.0
        %v545 = vmax.f32 %v525, 0.0
        %v546 = vmax.f32 %v528, 0.0
        %v547 = vpack.c.bf16 %v532, %v531
        %v548 = vpack.c.bf16 %v534, %v533
        %v549 = vpack.c.bf16 %v536, %v535
        %v550 = vpack.c.bf16 %v538, %v537
        %v551 = vpack.c.bf16 %v540, %v539
        %v552 = vpack.c.bf16 %v542, %v541
        %v553 = vpack.c.bf16 %v544, %v543
        %v554 = vpack.c.bf16 %v546, %v545
        %v555 = vld [vmem:[%s4] sm:$0xf]
        %v556 = vld [vmem:[%s4 + $0x4] sm:$0xf]
        %v557 = vld [vmem:[%s4 + $0x8] sm:$0xf]
        %v558 = vld [vmem:[%s4 + $0xc] sm:$0xf]
        %v559 = vld [vmem:[%s4 + $0x10] sm:$0xf]
        %v560 = vld [vmem:[%s4 + $0x14] sm:$0xf]
        %v561 = vld [vmem:[%s4 + $0x18] sm:$0xf]
        %v562 = vld [vmem:[%s4 + $0x1c] sm:$0xf]
        %v563 = vld [vmem:[%s5] sm:$0x1]
        %v565 = vlaneseq
        %v566 = vshrl.u32 %v565, 7
        %v567 = vsub.s32 0, %v566
        %v568 = vrot.slane %v563, %v567
        %v578 = vunpack.c.l.b16 %v555
        %v579 = vunpack.c.l.b16 %v556
        %v580 = vunpack.c.l.b16 %v557
        %v581 = vunpack.c.l.b16 %v558
        %v582 = vunpack.c.l.b16 %v559
        %v583 = vunpack.c.l.b16 %v560
        %v584 = vunpack.c.l.b16 %v561
        %v585 = vunpack.c.l.b16 %v562
        %v586 = vpack.c.b16 %v579, %v578
        %v587 = vpack.c.b16 %v581, %v580
        %v588 = vpack.c.b16 %v583, %v582
        %v589 = vpack.c.b16 %v585, %v584
        %vm594 = vcmask 523264
        %v596 = vsel %vm594, %v547, 0
        %v599 = vsel %vm594, %v548, 0
        %v602 = vsel %vm594, %v549, 0
        %v605 = vsel %vm594, %v550, 0
        %v608 = vsel %vm594, %v551, 0
        %v611 = vsel %vm594, %v552, 0
        %v614 = vsel %vm594, %v553, 0
        %v617 = vsel %vm594, %v554, 0
        %619 = vmatprep.subr.bf16.mxu0 0
        %620 = vmatpush1.bf16.msra.mxu0 0
        %621 = vmatprep.subr.bf16.mxu0 0
        %622 = vmatpush1.bf16.msra.mxu0 0
        %623 = vmatprep.subr.bf16.mxu0 0
        %624 = vmatpush1.bf16.msra.mxu0 0
        %625 = vmatprep.subr.bf16.mxu0 0
        %626 = vmatpush1.bf16.msra.mxu0 0
        %627 = vmatprep.subr.bf16.mxu0 0
        %628 = vmatpush1.bf16.msra.mxu0 %v589
        %629 = vmatprep.subr.bf16.mxu0 0
        %630 = vmatpush1.bf16.msra.mxu0 %v588
        %631 = vmatprep.subr.bf16.mxu0 0
        %632 = vmatpush1.bf16.msra.mxu0 %v587
        %633 = vmatprep.subr.bf16.mxu0 0
        %634 = vmatpush1.bf16.msra.mxu0 %v586
        %635 = vmatprep.subr.bf16.mxu0 0
        %636 = vmatpush2.bf16.msra.mxu0 0
        %637 = vmatprep.subr.bf16.mxu0 0
        %638 = vmatpush2.bf16.msra.mxu0 0
        %639 = vmatprep.subr.bf16.mxu0 0
        %640 = vmatpush2.bf16.msra.mxu0 0
        %641 = vmatprep.subr.bf16.mxu0 0
        %642 = vmatpush2.bf16.msra.mxu0 0
        %643 = vmatprep.subr.bf16.mxu0 0
        %644 = vmatpush2.bf16.msra.mxu0 0
        %645 = vmatprep.subr.bf16.mxu0 0
        %646 = vmatpush2.bf16.msra.mxu0 0
        %647 = vmatprep.subr.bf16.mxu0 0
        %648 = vmatpush2.bf16.msra.mxu0 0
        %649 = vmatprep.subr.bf16.mxu0 0
        %650 = vmatpush2.bf16.msra.mxu0 0
        %651 = vmatprep.mubr.bf16.mxu0 0
        %652 = vmatmul.mubr.bf16.gmra.mxu0 %v596
        %v653 = vpop.f32.mrf.mxu0
        %v654 = vadd.f32 %v568, %v653
        %v655 = vpop.f32.mrf.mxu0
        %v656 = vpop.f32.mrf.mxu0
        %v657 = vadd.f32 %v568, %v656
        %v658 = vpop.f32.mrf.mxu0
        %659 = vmatprep.mubr.bf16.mxu0 0
        %660 = vmatmul.mubr.bf16.gmra.mxu0 %v599
        %v661 = vpop.f32.mrf.mxu0
        %v662 = vadd.f32 %v568, %v661
        %v663 = vpop.f32.mrf.mxu0
        %v664 = vpop.f32.mrf.mxu0
        %v665 = vadd.f32 %v568, %v664
        %v666 = vpop.f32.mrf.mxu0
        %667 = vmatprep.mubr.bf16.mxu0 0
        %668 = vmatmul.mubr.bf16.gmra.mxu0 %v602
        %v669 = vpop.f32.mrf.mxu0
        %v670 = vadd.f32 %v568, %v669
        %v671 = vpop.f32.mrf.mxu0
        %v672 = vpop.f32.mrf.mxu0
        %v673 = vadd.f32 %v568, %v672
        %v674 = vpop.f32.mrf.mxu0
        %675 = vmatprep.mubr.bf16.mxu0 0
        %676 = vmatmul.mubr.bf16.gmra.mxu0 %v605
        %v677 = vpop.f32.mrf.mxu0
        %v678 = vadd.f32 %v568, %v677
        %v679 = vpop.f32.mrf.mxu0
        %v680 = vpop.f32.mrf.mxu0
        %v681 = vadd.f32 %v568, %v680
        %v682 = vpop.f32.mrf.mxu0
        %683 = vmatprep.mubr.bf16.mxu0 0
        %684 = vmatmul.mubr.bf16.gmra.mxu0 %v608
        %v685 = vpop.f32.mrf.mxu0
        %v686 = vadd.f32 %v568, %v685
        %v687 = vpop.f32.mrf.mxu0
        %v688 = vpop.f32.mrf.mxu0
        %v689 = vadd.f32 %v568, %v688
        %v690 = vpop.f32.mrf.mxu0
        %691 = vmatprep.mubr.bf16.mxu0 0
        %692 = vmatmul.mubr.bf16.gmra.mxu0 %v611
        %v693 = vpop.f32.mrf.mxu0
        %v694 = vadd.f32 %v568, %v693
        %v695 = vpop.f32.mrf.mxu0
        %v696 = vpop.f32.mrf.mxu0
        %v697 = vadd.f32 %v568, %v696
        %v698 = vpop.f32.mrf.mxu0
        %699 = vmatprep.mubr.bf16.mxu0 0
        %700 = vmatmul.mubr.bf16.gmra.mxu0 %v614
        %v701 = vpop.f32.mrf.mxu0
        %v702 = vadd.f32 %v568, %v701
        %v703 = vpop.f32.mrf.mxu0
        %v704 = vpop.f32.mrf.mxu0
        %v705 = vadd.f32 %v568, %v704
        %v706 = vpop.f32.mrf.mxu0
        %707 = vmatprep.mubr.bf16.mxu0 0
        %708 = vmatmul.mubr.bf16.gmra.mxu0 %v617
        %v709 = vpop.f32.mrf.mxu0
        %v710 = vadd.f32 %v568, %v709
        %v711 = vpop.f32.mrf.mxu0
        %v712 = vpop.f32.mrf.mxu0
        %v713 = vadd.f32 %v568, %v712
        %v714 = vpop.f32.mrf.mxu0
        %715 = vdwg.mxu0
        %v716 = vmax.f32 %v654, 0.0
        %v717 = vmax.f32 %v657, 0.0
        %v718 = vmax.f32 %v662, 0.0
        %v719 = vmax.f32 %v665, 0.0
        %v720 = vmax.f32 %v670, 0.0
        %v721 = vmax.f32 %v673, 0.0
        %v722 = vmax.f32 %v678, 0.0
        %v723 = vmax.f32 %v681, 0.0
        %v724 = vmax.f32 %v686, 0.0
        %v725 = vmax.f32 %v689, 0.0
        %v726 = vmax.f32 %v694, 0.0
        %v727 = vmax.f32 %v697, 0.0
        %v728 = vmax.f32 %v702, 0.0
        %v729 = vmax.f32 %v705, 0.0
        %v730 = vmax.f32 %v710, 0.0
        %v731 = vmax.f32 %v713, 0.0
        %v732 = vpack.c.bf16 %v717, %v716
        %v733 = vpack.c.bf16 %v719, %v718
        %v734 = vpack.c.bf16 %v721, %v720
        %v735 = vpack.c.bf16 %v723, %v722
        %v736 = vpack.c.bf16 %v725, %v724
        %v737 = vpack.c.bf16 %v727, %v726
        %v738 = vpack.c.bf16 %v729, %v728
        %v739 = vpack.c.bf16 %v731, %v730
        %v740 = vld [vmem:[%s6] sm:$0xf]
        %v741 = vld [vmem:[%s6 + $0x4] sm:$0xf]
        %v742 = vld [vmem:[%s6 + $0x8] sm:$0xf]
        %v743 = vld [vmem:[%s6 + $0xc] sm:$0xf]
        %v744 = vld [vmem:[%s6 + $0x10] sm:$0xf]
        %v745 = vld [vmem:[%s6 + $0x14] sm:$0xf]
        %v746 = vld [vmem:[%s6 + $0x18] sm:$0xf]
        %v747 = vld [vmem:[%s6 + $0x1c] sm:$0xf]
        %v748 = vld [vmem:[%s6 + $0x20] sm:$0xf]
        %v749 = vld [vmem:[%s6 + $0x24] sm:$0xf]
        %v750 = vld [vmem:[%s6 + $0x28] sm:$0xf]
        %v751 = vld [vmem:[%s6 + $0x2c] sm:$0xf]
        %v752 = vld [vmem:[%s6 + $0x30] sm:$0xf]
        %v753 = vld [vmem:[%s6 + $0x34] sm:$0xf]
        %v754 = vld [vmem:[%s6 + $0x38] sm:$0xf]
        %v755 = vld [vmem:[%s6 + $0x3c] sm:$0xf]
        %v756 = vld [vmem:[%s7] sm:$0x1]
        %v758 = vlaneseq
        %v759 = vshrl.u32 %v758, 7
        %v760 = vsub.s32 0, %v759
        %v761 = vrot.slane %v756, %v760
        %v779 = vunpack.c.l.b16 %v740
        %v780 = vunpack.c.l.b16 %v741
        %v781 = vunpack.c.l.b16 %v742
        %v782 = vunpack.c.l.b16 %v743
        %v783 = vunpack.c.l.b16 %v744
        %v784 = vunpack.c.l.b16 %v745
        %v785 = vunpack.c.l.b16 %v746
        %v786 = vunpack.c.l.b16 %v747
        %v787 = vunpack.c.l.b16 %v748
        %v788 = vunpack.c.l.b16 %v749
        %v789 = vunpack.c.l.b16 %v750
        %v790 = vunpack.c.l.b16 %v751
        %v791 = vunpack.c.l.b16 %v752
        %v792 = vunpack.c.l.b16 %v753
        %v793 = vunpack.c.l.b16 %v754
        %v794 = vunpack.c.l.b16 %v755
        %v795 = vpack.c.b16 %v780, %v779
        %v796 = vpack.c.b16 %v782, %v781
        %v797 = vpack.c.b16 %v784, %v783
        %v798 = vpack.c.b16 %v786, %v785
        %v799 = vpack.c.b16 %v788, %v787
        %v800 = vpack.c.b16 %v790, %v789
        %v801 = vpack.c.b16 %v792, %v791
        %v802 = vpack.c.b16 %v794, %v793
        %811 = vmatprep.subr.bf16.mxu0 0
        %812 = vmatpush1.bf16.msra.mxu0 %v802
        %813 = vmatprep.subr.bf16.mxu0 0
        %814 = vmatpush1.bf16.msra.mxu0 %v801
        %815 = vmatprep.subr.bf16.mxu0 0
        %816 = vmatpush1.bf16.msra.mxu0 %v800
        %817 = vmatprep.subr.bf16.mxu0 0
        %818 = vmatpush1.bf16.msra.mxu0 %v799
        %819 = vmatprep.subr.bf16.mxu0 0
        %820 = vmatpush1.bf16.msra.mxu0 %v798
        %821 = vmatprep.subr.bf16.mxu0 0
        %822 = vmatpush1.bf16.msra.mxu0 %v797
        %823 = vmatprep.subr.bf16.mxu0 0
        %824 = vmatpush1.bf16.msra.mxu0 %v796
        %825 = vmatprep.subr.bf16.mxu0 0
        %826 = vmatpush1.bf16.msra.mxu0 %v795
        %827 = vmatprep.subr.bf16.mxu0 0
        %828 = vmatpush2.bf16.msra.mxu0 0
        %829 = vmatprep.subr.bf16.mxu0 0
        %830 = vmatpush2.bf16.msra.mxu0 0
        %831 = vmatprep.subr.bf16.mxu0 0
        %832 = vmatpush2.bf16.msra.mxu0 0
        %833 = vmatprep.subr.bf16.mxu0 0
        %834 = vmatpush2.bf16.msra.mxu0 0
        %835 = vmatprep.subr.bf16.mxu0 0
        %836 = vmatpush2.bf16.msra.mxu0 0
        %837 = vmatprep.subr.bf16.mxu0 0
        %838 = vmatpush2.bf16.msra.mxu0 0
        %839 = vmatprep.subr.bf16.mxu0 0
        %840 = vmatpush2.bf16.msra.mxu0 0
        %841 = vmatprep.subr.bf16.mxu0 0
        %842 = vmatpush2.bf16.msra.mxu0 0
        %843 = vmatprep.mubr.bf16.mxu0 0
        %844 = vmatmul.mubr.bf16.gmra.mxu0 %v732
        %v845 = vpop.f32.mrf.mxu0
        %v846 = vadd.f32 %v761, %v845
        %v847 = vpop.f32.mrf.mxu0
        %v848 = vpop.f32.mrf.mxu0
        %v849 = vadd.f32 %v761, %v848
        %v850 = vpop.f32.mrf.mxu0
        %851 = vmatprep.mubr.bf16.mxu0 0
        %852 = vmatmul.mubr.bf16.gmra.mxu0 %v733
        %v853 = vpop.f32.mrf.mxu0
        %v854 = vadd.f32 %v761, %v853
        %v855 = vpop.f32.mrf.mxu0
        %v856 = vpop.f32.mrf.mxu0
        %v857 = vadd.f32 %v761, %v856
        %v858 = vpop.f32.mrf.mxu0
        %859 = vmatprep.mubr.bf16.mxu0 0
        %860 = vmatmul.mubr.bf16.gmra.mxu0 %v734
        %v861 = vpop.f32.mrf.mxu0
        %v862 = vadd.f32 %v761, %v861
        %v863 = vpop.f32.mrf.mxu0
        %v864 = vpop.f32.mrf.mxu0
        %v865 = vadd.f32 %v761, %v864
        %v866 = vpop.f32.mrf.mxu0
        %867 = vmatprep.mubr.bf16.mxu0 0
        %868 = vmatmul.mubr.bf16.gmra.mxu0 %v735
        %v869 = vpop.f32.mrf.mxu0
        %v870 = vadd.f32 %v761, %v869
        %v871 = vpop.f32.mrf.mxu0
        %v872 = vpop.f32.mrf.mxu0
        %v873 = vadd.f32 %v761, %v872
        %v874 = vpop.f32.mrf.mxu0
        %875 = vmatprep.mubr.bf16.mxu0 0
        %876 = vmatmul.mubr.bf16.gmra.mxu0 %v736
        %v877 = vpop.f32.mrf.mxu0
        %v878 = vadd.f32 %v761, %v877
        %v879 = vpop.f32.mrf.mxu0
        %v880 = vpop.f32.mrf.mxu0
        %v881 = vadd.f32 %v761, %v880
        %v882 = vpop.f32.mrf.mxu0
        %883 = vmatprep.mubr.bf16.mxu0 0
        %884 = vmatmul.mubr.bf16.gmra.mxu0 %v737
        %v885 = vpop.f32.mrf.mxu0
        %v886 = vadd.f32 %v761, %v885
        %v887 = vpop.f32.mrf.mxu0
        %v888 = vpop.f32.mrf.mxu0
        %v889 = vadd.f32 %v761, %v888
        %v890 = vpop.f32.mrf.mxu0
        %891 = vmatprep.mubr.bf16.mxu0 0
        %892 = vmatmul.mubr.bf16.gmra.mxu0 %v738
        %v893 = vpop.f32.mrf.mxu0
        %v894 = vadd.f32 %v761, %v893
        %v895 = vpop.f32.mrf.mxu0
        %v896 = vpop.f32.mrf.mxu0
        %v897 = vadd.f32 %v761, %v896
        %v898 = vpop.f32.mrf.mxu0
        %899 = vmatprep.mubr.bf16.mxu0 0
        %900 = vmatmul.mubr.bf16.gmra.mxu0 %v739
        %v901 = vpop.f32.mrf.mxu0
        %v902 = vadd.f32 %v761, %v901
        %v903 = vpop.f32.mrf.mxu0
        %v904 = vpop.f32.mrf.mxu0
        %v905 = vadd.f32 %v761, %v904
        %v906 = vpop.f32.mrf.mxu0
        %907 = vdwg.mxu0
        %v908 = vmax.f32 %v846, 0.0
        %v909 = vmax.f32 %v849, 0.0
        %v910 = vmax.f32 %v854, 0.0
        %v911 = vmax.f32 %v857, 0.0
        %v912 = vmax.f32 %v862, 0.0
        %v913 = vmax.f32 %v865, 0.0
        %v914 = vmax.f32 %v870, 0.0
        %v915 = vmax.f32 %v873, 0.0
        %v916 = vmax.f32 %v878, 0.0
        %v917 = vmax.f32 %v881, 0.0
        %v918 = vmax.f32 %v886, 0.0
        %v919 = vmax.f32 %v889, 0.0
        %v920 = vmax.f32 %v894, 0.0
        %v921 = vmax.f32 %v897, 0.0
        %v922 = vmax.f32 %v902, 0.0
        %v923 = vmax.f32 %v905, 0.0
        %924 = vst [vmem:[%s315] sm:$0xff] %v908
        %925 = vst [vmem:[%s315 + $0x8] sm:$0xff] %v909
        %926 = vst [vmem:[%s315 + $0x10] sm:$0xff] %v910
        %927 = vst [vmem:[%s315 + $0x18] sm:$0xff] %v911
        %928 = vst [vmem:[%s315 + $0x20] sm:$0xff] %v912
        %929 = vst [vmem:[%s315 + $0x28] sm:$0xff] %v913
        %930 = vst [vmem:[%s315 + $0x30] sm:$0xff] %v914
        %931 = vst [vmem:[%s315 + $0x38] sm:$0xff] %v915
        %932 = vst [vmem:[%s315 + $0x40] sm:$0xff] %v916
        %933 = vst [vmem:[%s315 + $0x48] sm:$0xff] %v917
        %934 = vst [vmem:[%s315 + $0x50] sm:$0xff] %v918
        %935 = vst [vmem:[%s315 + $0x58] sm:$0xff] %v919
        %936 = vst [vmem:[%s315 + $0x60] sm:$0xff] %v920
        %937 = vst [vmem:[%s315 + $0x68] sm:$0xff] %v921
        %938 = vst [vmem:[%s315 + $0x70] sm:$0xff] %v922
        %939 = vst [vmem:[%s315 + $0x78] sm:$0xff] %v923
        %s940 = sand.u32 %s208, 1
        %s941 = scalar_lea.sflag [#allocation3], %s940
        %s942 = sand.u32 %s208, 1
        %s943 = smul.addr %s942, 128
        %s944 = scalar_lea.vmem [#allocation2], %s943
        // Predicated region
        $region53: #{tpu_custom_call.1} parent=51 // pred_check
          %p945 = pneg %p218
        $region54: #{tpu_custom_call.1} parent=51 // pred_check_branch
          %947 = sbr.rel (%p945) target = $region56
        $region55: #{tpu_custom_call.1} parent=51 // pred_region
          %s948 = smul.u32 16, %s22
          %s950 = ssub.s32 2048, 2048
          %951 = vsyncadd %s941, %s950
          %s952 = smul.addr %s948, 128
          %s953 = scalar_lea.hbm %s8, %s952
          %s954 = sshll.u32 %s944, 4
          %s955 = int_to_ptr.vmem [resolvable:$true] %s954
          %960 = dma.vmem_to_hbm [thread:$0]  %s955, 2048, %s953, %s941, 128, 128, 8
        $region56: #{tpu_custom_call.1} parent=51 // pred_fallthru
          _
      $region52: #{tpu_custom_call.1} parent=5 // pred_fallthru
        _
      %p961 = scmp.le.s32.totalorder 2, %s17
      // Predicated region
      $region57: #{tpu_custom_call.1} parent=5 // pred_check
        %p962 = pneg %p961
      $region58: #{tpu_custom_call.1} parent=5 // pred_check_branch
        %964 = sbr.rel (%p962) target = $region60
      $region59: #{tpu_custom_call.1} parent=5 // pred_region
        %s965 = ssub.s32 %s17, 2
        // Predicated region
        $region61: #{tpu_custom_call.1} parent=59 // pred_check
          %p966 = pneg %p224
        $region62: #{tpu_custom_call.1} parent=59 // pred_check_branch
          %968 = sbr.rel (%p966) target = $region64
        $region63: #{tpu_custom_call.1} parent=59 // pred_region
          %s969 = sand.u32 %s209, 1
          %s970 = scalar_lea.sflag [#allocation3], %s969
          %s971 = sand.u32 %s209, 1
          %s972 = smul.addr %s971, 128
          %s973 = scalar_lea.vmem [#allocation2], %s972
          %974 = dma.done %s970, 2048
        $region64: #{tpu_custom_call.1} parent=59 // pred_fallthru
          _
      $region60: #{tpu_custom_call.1} parent=5 // pred_fallthru
        _
    $region6: #{tpu_custom_call.1} parent=1 // loop_footer
      %s21 = sadd.s32 1, %s17
    $region7: #{tpu_custom_call.1} parent=1 // loop_footer_branch
      %16 = sbr.rel target = $region3
    $region8: #{tpu_custom_call.1} parent=1 // loop_exit
      _
    %975 = vsyncpa [#allocation3], 1
    %s976 = scalar_lea.sflag [#allocation3], 1
    %977 = vsyncpa %s976, 1

</llo_original>
